<compile_context>
chip_gen: v5e
topology: v5e:2x2
jax: 0.10.0
libtpu: 0.0.40
codegen_flags: <defaults>
</compile_context>

<pallas_src>
import functools

import jax
import jax.numpy as jnp
from jax import lax
from jax.experimental import pallas as pl
from jax.experimental.pallas import tpu as pltpu


def _cosine_distance_kernel(x_ref, y_ref, o_ref, sxy_ref, sxx_ref, syy_ref,
                            *, eps):
    k = pl.program_id(1)  # hidden (reduction) axis — last grid axis

    @pl.when(k == 0)
    def _init():
        sxy_ref[...] = jnp.zeros_like(sxy_ref)
        sxx_ref[...] = jnp.zeros_like(sxx_ref)
        syy_ref[...] = jnp.zeros_like(syy_ref)

    x = x_ref[...]
    y = y_ref[...]
    # Multiply in the native dtype (packed bf16 on v6e/v7x), accumulate in f32.
    sxy_ref[...] += jnp.sum(x * y, axis=-1, keepdims=True, dtype=jnp.float32)
    sxx_ref[...] += jnp.sum(x * x, axis=-1, keepdims=True, dtype=jnp.float32)
    syy_ref[...] += jnp.sum(y * y, axis=-1, keepdims=True, dtype=jnp.float32)

    @pl.when(k == pl.num_programs(1) - 1)
    def _finalize():
        # rsqrt goes to the EUP slot -> cheaper than sqrt+sqrt+divide on VPU.
        inv = (lax.rsqrt(jnp.maximum(sxx_ref[...], eps)) *
               lax.rsqrt(jnp.maximum(syy_ref[...], eps)))
        o_ref[...] = 1.0 - sxy_ref[...] * inv


def _divisors(n):
    ds = set()
    i = 1
    while i * i <= n:
        if n % i == 0:
            ds.add(i)
            ds.add(n // i)
        i += 1
    return sorted(ds)


def _vmem_capacity_bytes():
    try:
        return int(pltpu.get_tpu_info().vmem_capacity_bytes)
    except Exception:
        return 64 * 1024 * 1024  # conservative (v7x-sized) fallback


def _select_blocks(B, H, itemsize):
    """Generation-aware tile selection.

    Keeps 2 inputs x 2 pipeline buffers within ~1/4 of physical VMEM, i.e.
    per-input tiles of ~8 MiB on v5e/v6e (128 MiB VMEM) and ~4 MiB on v7x
    (64 MiB VMEM) — the measured HBM-roofline sweet spot for this
    bandwidth-bound kernel.
    """
    vmem = _vmem_capacity_bytes()
    tile_budget = max(vmem // 16, 1 << 20)        # per-input-tile byte budget
    row_mult = 16 if itemsize == 2 else 8         # sublane multiple

    # Hidden (reduction) block: keep full H unless that would squeeze the
    # batch block below ~256 rows; then take the largest 128-multiple divisor
    # of H that fits the budget.
    target_rows = min(B, 256)
    target_rows = max(row_mult, (target_rows // row_mult) * row_mult)
    if target_rows * H * itemsize <= tile_budget or H % 128 != 0:
        block_h = H
    else:
        cap_h = max(128, tile_budget // (target_rows * itemsize))
        fitting_h = [d for d in _divisors(H) if d % 128 == 0 and d <= cap_h]
        block_h = max(fitting_h) if fitting_h else H

    # Batch block: largest divisor of B that is a row_mult multiple (or == B)
    # and keeps the tile within budget.
    cap_b = max(row_mult, tile_budget // (block_h * itemsize))
    fitting_b = [d for d in _divisors(B)
                 if d <= cap_b and (d % row_mult == 0 or d == B)]
    block_b = max(fitting_b) if fitting_b else B

    # Prefer >=2 batch steps on non-trivial problems so the DMA pipeline and,
    # on v7x, both TensorCores have work.
    if block_b == B and B * H * itemsize > (2 << 20):
        smaller = [d for d in _divisors(B) if d < B and d % row_mult == 0]
        if smaller:
            block_b = max(smaller)

    return block_b, block_h, vmem


def cosine_distance(input1, input2, *, block_b=None, block_h=None, eps=1e-8):
    """Cosine distance 1 - <x,y>/(|x||y|) reduced over the last axis.

    input1, input2: (B, H) arrays of identical shape/dtype.
    Returns: (B,) float32.
    """
    assert input1.shape == input2.shape, "inputs must have the same shape"
    assert input1.ndim == 2, "expected (batch, hidden) inputs"
    B, H = input1.shape
    itemsize = jnp.dtype(input1.dtype).itemsize

    auto_b, auto_h, vmem = _select_blocks(B, H, itemsize)
    if block_b is None:
        block_b = auto_b
    if block_h is None:
        block_h = auto_h

    row_mult = 16 if itemsize == 2 else 8
    assert B % block_b == 0, "block_b must divide the batch size"
    assert H % block_h == 0, "block_h must divide the hidden size"
    assert block_b == B or block_b % row_mult == 0, (
        f"block_b must be a multiple of {row_mult} (or equal to B)")
    assert block_h == H or block_h % 128 == 0, (
        "block_h must be a multiple of 128 (or equal to H)")

    grid = (B // block_b, H // block_h)

    # Scoped-VMEM limit sized for the chosen tiles + double-buffering headroom
    # so the compiler neither shrinks buffering nor rejects large tiles.
    tile_bytes = block_b * block_h * itemsize
    acc_bytes = 3 * block_b * 128 * 4           # (block_b,1) f32 pads to 128 lanes
    out_bytes = 2 * block_b * 128 * 4
    needed = 2 * 2 * tile_bytes + acc_bytes + out_bytes + (2 << 20)
    vmem_limit = int(min(vmem, max(needed, 32 << 20)))

    kernel = functools.partial(_cosine_distance_kernel, eps=float(eps))

    # NOTE: output last-dim is 1 (masked vst) but is tiny and written only in
    # the epilogue of each batch block, so it is off the critical path.
    out = pl.pallas_call(
        kernel,
        out_shape=jax.ShapeDtypeStruct((B, 1), jnp.float32),
        grid_spec=pltpu.PrefetchScalarGridSpec(
            num_scalar_prefetch=0,
            grid=grid,
            in_specs=[
                pl.BlockSpec((block_b, block_h), lambda i, k: (i, k)),
                pl.BlockSpec((block_b, block_h), lambda i, k: (i, k)),
            ],
            out_specs=pl.BlockSpec((block_b, 1), lambda i, k: (i, 0)),
            scratch_shapes=[
                pltpu.VMEM((block_b, 1), jnp.float32),   # sum(x*y)
                pltpu.VMEM((block_b, 1), jnp.float32),   # sum(x*x)
                pltpu.VMEM((block_b, 1), jnp.float32),   # sum(y*y)
            ],
        ),
        compiler_params=pltpu.CompilerParams(
            dimension_semantics=("parallel", "arbitrary"),
            vmem_limit_bytes=vmem_limit,
        ),
    )(input1, input2)

    return out[:, 0]  # (B,) to match torch.sum(..., dim=-1) output shape


if __name__ == "__main__":
    key = jax.random.PRNGKey(0)
    k1, k2 = jax.random.split(key)

    B, H = 8, 32  # batch_size, hidden_dim
    x = jax.random.normal(k1, (B, H), dtype=jnp.float32)
    y = jax.random.normal(k2, (B, H), dtype=jnp.float32)

    out = cosine_distance(x, y)
    out = jax.block_until_ready(out)

    # Reference check in plain JAX (same math as the PyTorch forward).
    num = jnp.sum(x * y, axis=-1)
    den = jnp.sqrt(jnp.sum(x * x, axis=-1)) * jnp.sqrt(jnp.sum(y * y, axis=-1))
    ref = 1.0 - num / den
    assert out.shape == (B,)
    assert jnp.allclose(out, ref, atol=1e-5, rtol=1e-5)

    print("KERNEL_OK")
</pallas_src>

<mosaic_0001>
module attributes {stable_mosaic.version = 11 : i64} {
  func.func @_cosine_distance_kernel(%arg0: i32, %arg1: i32, %arg2: memref<8x32xf32, #tpu.memory_space<vmem>>, %arg3: memref<8x32xf32, #tpu.memory_space<vmem>>, %arg4: memref<8x1xf32, #tpu.memory_space<vmem>>, %arg5: memref<8x1xf32, #tpu.memory_space<vmem>>, %arg6: memref<8x1xf32, #tpu.memory_space<vmem>>, %arg7: memref<8x1xf32, #tpu.memory_space<vmem>>) attributes {dimension_semantics = [#tpu.dimension_semantics<parallel>, #tpu.dimension_semantics<arbitrary>], iteration_bounds = array<i64: 1, 1>, scalar_prefetch = 0 : i64, scratch_operands = 3 : i64, tpu.core_type = #tpu.core_type<tc>, window_params = [{transform_indices = @transform_0, window_bounds = array<i64: 8, 32>}, {transform_indices = @transform_1, window_bounds = array<i64: 8, 32>}, {transform_indices = @transform_2, window_bounds = array<i64: 8, 1>}]} {
    %c0_i32 = arith.constant 0 : i32
    %0 = arith.cmpi eq, %arg1, %c0_i32 : i32
    %1 = arith.extui %0 : i1 to i32
    %c0_i32_0 = arith.constant 0 : i32
    %2 = arith.cmpi ne, %1, %c0_i32_0 : i32
    scf.if %2 {
      %cst_20 = arith.constant 0.000000e+00 : f32
      %26 = vector.broadcast %cst_20 : f32 to vector<8x1xf32>
      %c0_21 = arith.constant 0 : index
      %c0_22 = arith.constant 0 : index
      %27 = vector.load %arg5[%c0_21, %c0_22] : memref<8x1xf32, #tpu.memory_space<vmem>>, vector<8x1xf32>
      tpu.vector_store %arg5[%c0_21, %c0_22], %26 {strides = array<i32>} : memref<8x1xf32, #tpu.memory_space<vmem>>, vector<8x1xf32>,
      %cst_23 = arith.constant 0.000000e+00 : f32
      %28 = vector.broadcast %cst_23 : f32 to vector<8x1xf32>
      %c0_24 = arith.constant 0 : index
      %c0_25 = arith.constant 0 : index
      %29 = vector.load %arg6[%c0_24, %c0_25] : memref<8x1xf32, #tpu.memory_space<vmem>>, vector<8x1xf32>
      tpu.vector_store %arg6[%c0_24, %c0_25], %28 {strides = array<i32>} : memref<8x1xf32, #tpu.memory_space<vmem>>, vector<8x1xf32>,
      %cst_26 = arith.constant 0.000000e+00 : f32
      %30 = vector.broadcast %cst_26 : f32 to vector<8x1xf32>
      %c0_27 = arith.constant 0 : index
      %c0_28 = arith.constant 0 : index
      %31 = vector.load %arg7[%c0_27, %c0_28] : memref<8x1xf32, #tpu.memory_space<vmem>>, vector<8x1xf32>
      tpu.vector_store %arg7[%c0_27, %c0_28], %30 {strides = array<i32>} : memref<8x1xf32, #tpu.memory_space<vmem>>, vector<8x1xf32>,
    } else {
    }
    %c0 = arith.constant 0 : index
    %c0_1 = arith.constant 0 : index
    %3 = vector.load %arg2[%c0, %c0_1] : memref<8x32xf32, #tpu.memory_space<vmem>>, vector<8x32xf32>
    %c0_2 = arith.constant 0 : index
    %c0_3 = arith.constant 0 : index
    %4 = vector.load %arg3[%c0_2, %c0_3] : memref<8x32xf32, #tpu.memory_space<vmem>>, vector<8x32xf32>
    %c0_4 = arith.constant 0 : index
    %c0_5 = arith.constant 0 : index
    %5 = vector.load %arg5[%c0_4, %c0_5] : memref<8x1xf32, #tpu.memory_space<vmem>>, vector<8x1xf32>
    %6 = arith.mulf %3, %4 : vector<8x32xf32>
    %cst = arith.constant dense<0.000000e+00> : vector<8xf32>
    %7 = vector.multi_reduction <add>, %6, %cst [1] : vector<8x32xf32> to vector<8xf32>
    %8 = vector.shape_cast %7 : vector<8xf32> to vector<8x1xf32>
    %9 = arith.addf %5, %8 : vector<8x1xf32>
    %c0_6 = arith.constant 0 : index
    %c0_7 = arith.constant 0 : index
    %10 = vector.load %arg5[%c0_6, %c0_7] : memref<8x1xf32, #tpu.memory_space<vmem>>, vector<8x1xf32>
    tpu.vector_store %arg5[%c0_6, %c0_7], %9 {strides = array<i32>} : memref<8x1xf32, #tpu.memory_space<vmem>>, vector<8x1xf32>,
    %c0_8 = arith.constant 0 : index
    %c0_9 = arith.constant 0 : index
    %11 = vector.load %arg6[%c0_8, %c0_9] : memref<8x1xf32, #tpu.memory_space<vmem>>, vector<8x1xf32>
    %12 = arith.mulf %3, %3 : vector<8x32xf32>
    %cst_10 = arith.constant dense<0.000000e+00> : vector<8xf32>
    %13 = vector.multi_reduction <add>, %12, %cst_10 [1] : vector<8x32xf32> to vector<8xf32>
    %14 = vector.shape_cast %13 : vector<8xf32> to vector<8x1xf32>
    %15 = arith.addf %11, %14 : vector<8x1xf32>
    %c0_11 = arith.constant 0 : index
    %c0_12 = arith.constant 0 : index
    %16 = vector.load %arg6[%c0_11, %c0_12] : memref<8x1xf32, #tpu.memory_space<vmem>>, vector<8x1xf32>
    tpu.vector_store %arg6[%c0_11, %c0_12], %15 {strides = array<i32>} : memref<8x1xf32, #tpu.memory_space<vmem>>, vector<8x1xf32>,
    %c0_13 = arith.constant 0 : index
    %c0_14 = arith.constant 0 : index
    %17 = vector.load %arg7[%c0_13, %c0_14] : memref<8x1xf32, #tpu.memory_space<vmem>>, vector<8x1xf32>
    %18 = arith.mulf %4, %4 : vector<8x32xf32>
    %cst_15 = arith.constant dense<0.000000e+00> : vector<8xf32>
    %19 = vector.multi_reduction <add>, %18, %cst_15 [1] : vector<8x32xf32> to vector<8xf32>
    %20 = vector.shape_cast %19 : vector<8xf32> to vector<8x1xf32>
    %21 = arith.addf %17, %20 : vector<8x1xf32>
    %c0_16 = arith.constant 0 : index
    %c0_17 = arith.constant 0 : index
    %22 = vector.load %arg7[%c0_16, %c0_17] : memref<8x1xf32, #tpu.memory_space<vmem>>, vector<8x1xf32>
    tpu.vector_store %arg7[%c0_16, %c0_17], %21 {strides = array<i32>} : memref<8x1xf32, #tpu.memory_space<vmem>>, vector<8x1xf32>,
    %c0_i32_18 = arith.constant 0 : i32
    %23 = arith.cmpi eq, %arg1, %c0_i32_18 : i32
    %24 = arith.extui %23 : i1 to i32
    %c0_i32_19 = arith.constant 0 : i32
    %25 = arith.cmpi ne, %24, %c0_i32_19 : i32
    scf.if %25 {
      %c0_20 = arith.constant 0 : index
      %c0_21 = arith.constant 0 : index
      %26 = vector.load %arg6[%c0_20, %c0_21] : memref<8x1xf32, #tpu.memory_space<vmem>>, vector<8x1xf32>
      %cst_22 = arith.constant 9.99999993E-9 : f32
      %27 = vector.broadcast %cst_22 : f32 to vector<8x1xf32>
      %28 = arith.maximumf %26, %27 : vector<8x1xf32>
      %29 = math.rsqrt %28 : vector<8x1xf32>
      %c0_23 = arith.constant 0 : index
      %c0_24 = arith.constant 0 : index
      %30 = vector.load %arg7[%c0_23, %c0_24] : memref<8x1xf32, #tpu.memory_space<vmem>>, vector<8x1xf32>
      %cst_25 = arith.constant 9.99999993E-9 : f32
      %31 = vector.broadcast %cst_25 : f32 to vector<8x1xf32>
      %32 = arith.maximumf %30, %31 : vector<8x1xf32>
      %33 = math.rsqrt %32 : vector<8x1xf32>
      %34 = arith.mulf %29, %33 : vector<8x1xf32>
      %c0_26 = arith.constant 0 : index
      %c0_27 = arith.constant 0 : index
      %35 = vector.load %arg5[%c0_26, %c0_27] : memref<8x1xf32, #tpu.memory_space<vmem>>, vector<8x1xf32>
      %36 = arith.mulf %35, %34 : vector<8x1xf32>
      %cst_28 = arith.constant 1.000000e+00 : f32
      %37 = vector.broadcast %cst_28 : f32 to vector<8x1xf32>
      %38 = arith.subf %37, %36 : vector<8x1xf32>
      %c0_29 = arith.constant 0 : index
      %c0_30 = arith.constant 0 : index
      %39 = vector.load %arg4[%c0_29, %c0_30] : memref<8x1xf32, #tpu.memory_space<vmem>>, vector<8x1xf32>
      tpu.vector_store %arg4[%c0_29, %c0_30], %38 {strides = array<i32>} : memref<8x1xf32, #tpu.memory_space<vmem>>, vector<8x1xf32>,
    } else {
    }
    return
  }
  func.func @transform_0(%arg0: i32, %arg1: i32) -> (i32, i32) {
    %c0_i32 = arith.constant 0 : i32
    return %arg0, %arg1 : i32, i32
  }
  func.func @transform_1(%arg0: i32, %arg1: i32) -> (i32, i32) {
    %c0_i32 = arith.constant 0 : i32
    return %arg0, %arg1 : i32, i32
  }
  func.func @transform_2(%arg0: i32, %arg1: i32) -> (i32, i32) {
    %c0_i32 = arith.constant 0 : i32
    %c0_i32_0 = arith.constant 0 : i32
    return %arg0, %c0_i32 : i32, i32
  }
}

</mosaic_0001>

<llo_original>
// kernel: tpu_custom_call.1
$region0: #{tpu_custom_call.1}
  #allocation0 [shape = 'u32[]', space=smem, size = 0x4, offset = 0x4, fixed_abs, tag = 'smem constant byte address 0x4 - core index']
  #allocation1 [shape = 'u32[72,128]{1,0:T(1,128)}', space=vmem, size = 0x9000, scoped, tag = 'internal scratch']
  #allocation2 [shape = 'f32[8,1]{1,0:T(8,128)}', space=vmem, size = 0x1000, scoped, tag = 'scratch operand']
  #allocation3 [shape = 'f32[8,1]{1,0:T(8,128)}', space=vmem, size = 0x1000, scoped, tag = 'scratch operand']
  #allocation4 [shape = 'f32[8,1]{1,0:T(8,128)}', space=vmem, size = 0x1000, scoped, tag = 'scratch operand']
  %s0 = inlined_call_operand.hbm [shape: f32[8,32], index: 0, kind: input, shape index: {}]
  %s1 = inlined_call_operand.hbm [shape: f32[8,32], index: 1, kind: input, shape index: {}]
  %s2 = inlined_call_operand.vmem [shape: f32[8,1], index: 2, kind: output, shape index: {}]
  %s3 = sld [smem:[#allocation0]]
  $region34: #{tpu_custom_call.1} parent=0
    _
  %s5 = ssub.s32 1, %s3
  %s6 = scalar_select 0, %s5, %s3
  $region1: #{tpu_custom_call.1} parent=0
    #allocation5 [shape = 'u8[4096]{0}', space=vmem, size = 0x1000, scoped, tag = 'input window, operand 0, single buffered']
    #allocation6 [shape = 's32[1]{0}', space=sflag, size = 0x4, scoped, tag = 'scoped memory for tpu_custom_call.1']
    #allocation7 [shape = 'u8[4096]{0}', space=vmem, size = 0x1000, scoped, tag = 'input window, operand 1, single buffered']
    #allocation8 [shape = 's32[1]{0}', space=sflag, size = 0x4, scoped, tag = 'scoped memory for tpu_custom_call.1']
    %7 = vsyncpa [#allocation6], 0
    %8 = vsyncpa [#allocation8], 0
    // Predicated region
    $region2: #{tpu_custom_call.1} parent=1 // pred_check
      _
    $region3: #{tpu_custom_call.1} parent=1 // pred_check_branch
      %10 = sbr.rel (0) target = $region5
    $region4: #{tpu_custom_call.1} parent=1 // pred_region
      %12 = vsyncadd [#allocation6], 0
      %s14 = sshll.u32 %s0, 4
      %s15 = int_to_ptr.hbm [resolvable:$true] %s14
      %s16 = sshll.u32 [#allocation5], 4
      %s17 = int_to_ptr.vmem [resolvable:$true] %s16
      %19 = dma.hbm_to_vmem [thread:$0]  %s15, 128, %s17, [#allocation6]
    $region5: #{tpu_custom_call.1} parent=1 // pred_fallthru
      _
    // Predicated region
    $region6: #{tpu_custom_call.1} parent=1 // pred_check
      _
    $region7: #{tpu_custom_call.1} parent=1 // pred_check_branch
      %21 = sbr.rel (0) target = $region9
    $region8: #{tpu_custom_call.1} parent=1 // pred_region
      %23 = vsyncadd [#allocation8], 0
      %s25 = sshll.u32 %s1, 4
      %s26 = int_to_ptr.hbm [resolvable:$true] %s25
      %s27 = sshll.u32 [#allocation7], 4
      %s28 = int_to_ptr.vmem [resolvable:$true] %s27
      %30 = dma.hbm_to_vmem [thread:$0]  %s26, 128, %s28, [#allocation8]
    $region9: #{tpu_custom_call.1} parent=1 // pred_fallthru
      _
    // Predicated region
    $region10: #{tpu_custom_call.1} parent=1 // pred_check
      _
    $region11: #{tpu_custom_call.1} parent=1 // pred_check_branch
      %32 = sbr.rel (0) target = $region13
    $region12: #{tpu_custom_call.1} parent=1 // pred_region
      %34 = dma.done [#allocation6], 128
    $region13: #{tpu_custom_call.1} parent=1 // pred_fallthru
      _
    // Predicated region
    $region14: #{tpu_custom_call.1} parent=1 // pred_check
      _
    $region15: #{tpu_custom_call.1} parent=1 // pred_check_branch
      %36 = sbr.rel (0) target = $region17
    $region16: #{tpu_custom_call.1} parent=1 // pred_region
      %38 = dma.done [#allocation8], 128
    $region17: #{tpu_custom_call.1} parent=1 // pred_fallthru
      _
    %p39 = scmp.eq.s32.totalorder 0, 0
    // Predicated region
    $region18: #{tpu_custom_call.1} parent=1 // pred_check
      %p40 = pneg %p39
    $region19: #{tpu_custom_call.1} parent=1 // pred_check_branch
      %42 = sbr.rel (%p40) target = $region21
    $region20: #{tpu_custom_call.1} parent=1 // pred_region
      %vm43 = vcmask 7168
      %44 = vst.msk [vmem:[#allocation2] sm:$0xff] %vm43, 0.0
      %45 = vst.msk [vmem:[#allocation3] sm:$0xff] %vm43, 0.0
      %46 = vst.msk [vmem:[#allocation4] sm:$0xff] %vm43, 0.0
    $region21: #{tpu_custom_call.1} parent=1 // pred_fallthru
      _
    %v47 = vld [vmem:[#allocation5] sm:$0xff]
    %v48 = vld [vmem:[#allocation7] sm:$0xff]
    %v49 = vld [vmem:[#allocation2] sm:$0xff]
    %v50 = vmul.f32 %v47, %v48
    %vm51 = vcmask 261120
    %v52 = vsel %vm51, %v50, 0.0
    %53 = vadd.xlane.f32.xlu0 %v52
    %v54 = vpop.xlane.xlu0 %53
    %v55 = vadd.f32 %v49, %v54
    %vm56 = vcmask 7168
    %57 = vst.msk [vmem:[#allocation2] sm:$0xff] %vm56, %v55
    %v58 = vld [vmem:[#allocation3] sm:$0xff]
    %v59 = vmul.f32 %v47, %v47
    %v60 = vsel %vm51, %v59, 0.0
    %61 = vadd.xlane.f32.xlu0 %v60
    %v62 = vpop.xlane.xlu0 %61
    %v63 = vadd.f32 %v58, %v62
    %64 = vst.msk [vmem:[#allocation3] sm:$0xff] %vm56, %v63
    %v65 = vld [vmem:[#allocation4] sm:$0xff]
    %v66 = vmul.f32 %v48, %v48
    %v67 = vsel %vm51, %v66, 0.0
    %68 = vadd.xlane.f32.xlu0 %v67
    %v69 = vpop.xlane.xlu0 %68
    %v70 = vadd.f32 %v65, %v69
    %71 = vst.msk [vmem:[#allocation4] sm:$0xff] %vm56, %v70
    // Predicated region
    $region22: #{tpu_custom_call.1} parent=1 // pred_check
      %p72 = pneg %p39
    $region23: #{tpu_custom_call.1} parent=1 // pred_check_branch
      %74 = sbr.rel (%p72) target = $region25
    $region24: #{tpu_custom_call.1} parent=1 // pred_region
      %v75 = vld [vmem:[#allocation3] sm:$0xff]
      %v76 = vmax.f32 %v75, 1e-08
      %v77 = vrsqrt.pop %v76
      %v78 = vmul.f32 %v77, %v76
      %v79 = vmul.f32 %v78, %v77
      %v80 = vmul.f32 0.5, %v79
      %v81 = vsub.f32 1.5, %v80
      %v82 = vmul.f32 %v77, %v81
      %vm83 = vweird.f32 %v76
      %vm84 = vweird.f32 %v77
      %vm85 = vmor %vm83, %vm84
      %v86 = vsel %vm85, %v77, %v82
      %v87 = vld [vmem:[#allocation4] sm:$0xff]
      %v88 = vmax.f32 %v87, 1e-08
      %v89 = vrsqrt.pop %v88
      %v90 = vmul.f32 %v89, %v88
      %v91 = vmul.f32 %v90, %v89
      %v92 = vmul.f32 0.5, %v91
      %v93 = vsub.f32 1.5, %v92
      %v94 = vmul.f32 %v89, %v93
      %vm95 = vweird.f32 %v88
      %vm96 = vweird.f32 %v89
      %vm97 = vmor %vm95, %vm96
      %v98 = vsel %vm97, %v89, %v94
      %v99 = vmul.f32 %v86, %v98
      %v100 = vld [vmem:[#allocation2] sm:$0xff]
      %v101 = vmul.f32 %v100, %v99
      %v102 = vsub.f32 1.0, %v101
      %103 = vst.msk [vmem:[%s2] sm:$0xff] %vm56, %v102
    $region25: #{tpu_custom_call.1} parent=1 // pred_fallthru
      _
    // Predicated region
    $region26: #{tpu_custom_call.1} parent=1 // pred_check
      _
    $region27: #{tpu_custom_call.1} parent=1 // pred_check_branch
      %105 = sbr.rel (0) target = $region29
    $region28: #{tpu_custom_call.1} parent=1 // pred_region
      _
    $region29: #{tpu_custom_call.1} parent=1 // pred_fallthru
      _
    // Predicated region
    $region30: #{tpu_custom_call.1} parent=1 // pred_check
      _
    $region31: #{tpu_custom_call.1} parent=1 // pred_check_branch
      %107 = sbr.rel (0) target = $region33
    $region32: #{tpu_custom_call.1} parent=1 // pred_region
      _
    $region33: #{tpu_custom_call.1} parent=1 // pred_fallthru
      _
    %108 = vsyncpa [#allocation6], 1
    %109 = vsyncpa [#allocation8], 1

</llo_original>
